<compile_context>
chip_gen: v5e
topology: v5e:2x2
jax: 0.10.0
libtpu: 0.0.40
codegen_flags: <defaults>
</compile_context>

<pallas_src>
import jax
import jax.numpy as jnp
from jax.experimental import pallas as pl
from jax.experimental.pallas import tpu as pltpu

# ---- YoloOneLoss default hyper-parameters -----------------------------------
BOX_WEIGHT = 7.5
OBJ_WEIGHT = 1.0
ASPECT_WEIGHT = 0.5
SHAPE_CONF_WEIGHT = 0.2
FOCAL_ALPHA = 0.25
FOCAL_GAMMA = 1.5
P5_BOOST = 1.2
LABEL_SMOOTHING = 0.0


# ---- in-kernel math helpers --------------------------------------------------
def _sigmoid(x):
    # Stable sigmoid with an exact divide (used in the CIoU geometry path).
    e = jnp.exp(-jnp.abs(x))
    r = 1.0 / (1.0 + e)
    return jnp.where(x >= 0.0, r, e * r)


def _atan(x):
    # Cephes single-precision atan approximation (Mosaic-safe ops only).
    sign = jnp.where(x < 0.0, -1.0, 1.0)
    ax = jnp.abs(x)
    big = ax > 2.414213562373095            # tan(3*pi/8)
    mid = jnp.logical_and(jnp.logical_not(big), ax > 0.4142135623730950)
    y = jnp.where(big, jnp.pi / 2.0, jnp.where(mid, jnp.pi / 4.0, 0.0))
    xr = jnp.where(big, -1.0 / jnp.maximum(ax, 1e-30),
                   jnp.where(mid, (ax - 1.0) / (ax + 1.0), ax))
    z = xr * xr
    p = (((8.05374449538e-2 * z - 1.38776856032e-1) * z
          + 1.99777106478e-1) * z - 3.33329491539e-1) * z * xr + xr
    return sign * (y + p)


def _focal_bce(x, t):
    # BCEWithLogits (stable form) + constant-alpha focal weighting, matching
    # the PyTorch reference: focal_weight = alpha * (1 - pt) ** gamma.
    # exp(-|x|) is shared between the BCE and the sigmoid; t is binary so
    # pt is a single select.  Approx reciprocal (EUP slot) is fine here: it
    # only scales the focal weight, never enters the box geometry.
    ax = jnp.abs(x)
    e = jnp.exp(-ax)
    bce = jnp.maximum(x, 0.0) - x * t + jnp.log(1.0 + e)
    if FOCAL_GAMMA > 0:
        r = pl.reciprocal(1.0 + e, approx=True)
        p = jnp.where(x >= 0.0, r, e * r)           # sigmoid(x)
        pt = jnp.where(t > 0.5, p, 1.0 - p)         # t * p + (1-t) * (1-p)
        u = jnp.maximum(1.0 - pt, 0.0)              # clamp for approx rcp
        focal_w = FOCAL_ALPHA * u * jnp.sqrt(u)     # (1 - pt) ** 1.5
        bce = focal_w * bce
    return bce


# ---- fused Pallas kernel: per-block masked per-lane partial sums -------------
# det channels: 0..3 pred x,y,w,h   4 pred conf
# tgt channels: 0..3 target x,y,w,h 4 pos mask  5 target aspect
def _yolo_fused_kernel(counts_ref, det_ref, asp_ref, shp_ref, tgt_ref, out_ref):
    br = det_ref.shape[2]

    px, py = det_ref[0, 0], det_ref[0, 1]
    pw, ph = det_ref[0, 2], det_ref[0, 3]
    pconf = det_ref[0, 4]
    pasp = asp_ref[0]
    pshape = shp_ref[0]
    tx, ty = tgt_ref[0, 0], tgt_ref[0, 1]
    tw, th = tgt_ref[0, 2], tgt_ref[0, 3]
    pos, tasp = tgt_ref[0, 4], tgt_ref[0, 5]

    # validity mask rebuilt from the scalar-prefetched per-block cell count
    n_valid = counts_ref[pl.program_id(0)]
    cell = (jax.lax.broadcasted_iota(jnp.int32, (br, 128), 0) * 128
            + jax.lax.broadcasted_iota(jnp.int32, (br, 128), 1))
    valid = jnp.where(cell < n_valid, 1.0, 0.0).astype(jnp.float32)
    neg = valid - pos                      # pos is a subset of valid

    # objectness / shape-confidence focal BCE (target == pos, smoothing = 0)
    obj_l = _focal_bce(pconf, pos)
    shape_l = _focal_bce(pshape, pos)

    # aspect MSE
    asp_d = pasp - tasp
    asp_se = asp_d * asp_d

    # anchor-free CIoU box loss (exact divides: geometry path stays accurate)
    sx, sy = _sigmoid(px), _sigmoid(py)    # pred box centre
    ew, eh = jnp.exp(pw), jnp.exp(ph)      # pred box w/h
    hew, heh = 0.5 * ew, 0.5 * eh          # hoisted/shared half-extents
    htw, hth = 0.5 * tw, 0.5 * th
    px1, px2 = sx - hew, sx + hew
    py1, py2 = sy - heh, sy + heh
    tx1, tx2 = tx - htw, tx + htw
    ty1, ty2 = ty - hth, ty + hth

    iw = jnp.maximum(jnp.minimum(px2, tx2) - jnp.maximum(px1, tx1), 0.0)
    ih = jnp.maximum(jnp.minimum(py2, ty2) - jnp.maximum(py1, ty1), 0.0)
    inter = iw * ih
    union = ew * eh + tw * th - inter
    iou = inter / jnp.maximum(union, 1e-6)

    enc_w = jnp.maximum(px2, tx2) - jnp.minimum(px1, tx1)
    enc_h = jnp.maximum(py2, ty2) - jnp.minimum(py1, ty1)
    c2 = enc_w * enc_w + enc_h * enc_h
    dx, dy = sx - tx, sy - ty
    rho2 = dx * dx + dy * dy               # centre distance^2

    a_t = tw / jnp.maximum(th, 1e-6)
    a_p = ew / jnp.maximum(eh, 1e-6)
    # atan(a_t) - atan(a_p) == atan((a_t - a_p) / (1 + a_t*a_p)) for a_t,a_p>=0
    d = (a_t - a_p) / (1.0 + a_t * a_p)
    at = _atan(d)
    v = (4.0 / (jnp.pi ** 2)) * at * at
    alpha = v / jnp.maximum(1.0 - iou + v, 1e-6)
    ciou = iou - rho2 / jnp.maximum(c2, 1e-6) - alpha * v
    box_l = 1.0 - ciou

    # fold each quantity to an (8,128) partial sum with pure VALU adds; the
    # tiny cross-sublane/cross-lane reduce happens in the wrapper.
    R = br // 8

    def fold(val):
        return jnp.sum(val.reshape(R, 8, 128), axis=0)

    out_ref[0, 0] = fold(obj_l * pos)       # positive objectness loss sum
    out_ref[0, 1] = fold(obj_l * neg)       # negative objectness loss sum
    out_ref[0, 2] = fold(pos)               # n_pos
    out_ref[0, 3] = fold(neg)               # n_neg
    out_ref[0, 4] = fold(shape_l * valid)   # shape-confidence loss sum
    out_ref[0, 5] = fold(asp_se * pos)      # aspect MSE sum
    out_ref[0, 6] = fold(box_l * pos)       # (1 - CIoU) sum
    out_ref[0, 7] = fold(valid)             # n_valid (= B*H*W)


# ---- plain-JAX glue ----------------------------------------------------------
def _choose_block_rows(n_cells_list):
    """Largest power-of-two rows in [8, 256] such that one (rows,128) block
    does not exceed the largest scale's cell count (keeps per-scale padding
    bounded while amortising the per-grid-step overhead)."""
    largest = max(max(n_cells_list), 1)
    r = 8
    while r < 256 and (2 * r) * 128 <= largest:
        r *= 2
    return r


def _build_target_channels(targets, batch_size, grid_h, grid_w):
    """Channel-major (6, B*H*W) target slab: tx, ty, tw, th, pos, aspect."""
    # TODO(synk): the per-target scatter (data-dependent indices) stays in
    # plain JAX; duplicates are resolved deterministically to the LAST in-range
    # target to match PyTorch's sequential writes.
    n = batch_size * grid_h * grid_w
    tgt = jnp.zeros((6, n), jnp.float32)
    num_t = targets.shape[0]
    if num_t == 0:
        return tgt
    b = targets[:, 0].astype(jnp.int32)
    xc, yc, w, h = targets[:, 2], targets[:, 3], targets[:, 4], targets[:, 5]
    gx = xc * grid_w
    gy = yc * grid_h
    gi = jnp.clip(gx, 0.0, grid_w - 1).astype(jnp.int32)
    gj = jnp.clip(gy, 0.0, grid_h - 1).astype(jnp.int32)
    ar = w / (h + 1e-6)
    na = ar / (1.0 + ar)
    vals = jnp.stack([gx - gi.astype(jnp.float32),
                      gy - gj.astype(jnp.float32),
                      w * grid_w, h * grid_h,
                      jnp.ones_like(gx), na], axis=0).astype(jnp.float32)
    flat = b * (grid_h * grid_w) + gj * grid_w + gi
    in_range = (b >= 0) & (b < batch_size)
    t_idx = jnp.arange(num_t)
    later = t_idx[None, :] > t_idx[:, None]
    dup_later = jnp.any((flat[None, :] == flat[:, None]) & later
                        & in_range[None, :], axis=1)
    keep = in_range & jnp.logical_not(dup_later)
    scatter_idx = jnp.where(keep, flat, n)          # out-of-bounds -> dropped
    return tgt.at[:, scatter_idx].set(vals, mode="drop")


def _pack_block_major(arr_cn, block_rows):
    """(C, N) channel-major -> (num_blocks, C, block_rows, 128) block-major
    (zero lane padding is numerically safe end-to-end)."""
    c, n = arr_cn.shape
    block_cells = block_rows * 128
    nblk = -(-n // block_cells)
    a = jnp.pad(arr_cn, ((0, 0), (0, nblk * block_cells - n)))
    a = a.reshape(c, nblk, block_rows, 128)
    return jnp.moveaxis(a, 1, 0)


def yolo_one_loss(predictions, targets):
    dets = predictions["detections"]
    asps = predictions["aspects"]
    shps = predictions["shape_confidences"]
    n_scales = len(dets)

    n_cells = [int(d.shape[0] * d.shape[2] * d.shape[3]) for d in dets]
    block_rows = _choose_block_rows(n_cells)
    block_cells = block_rows * 128

    det_slabs, asp_slabs, shp_slabs, tgt_slabs = [], [], [], []
    counts, scale_blocks = [], []
    for si in range(n_scales):
        det = dets[si]
        bsz, _, hh, ww = det.shape
        n = bsz * hh * ww
        nblk = -(-n // block_cells)
        scale_blocks.append(nblk)
        for j in range(nblk):
            counts.append(min(block_cells, n - j * block_cells))

        det_cn = jnp.transpose(det, (1, 0, 2, 3)).reshape(5, n).astype(jnp.float32)
        asp_cn = asps[si].astype(jnp.float32).reshape(1, n)    # (B,1,H,W) -> b,h,w
        shp_cn = shps[si].astype(jnp.float32).reshape(1, n)
        tgt_cn = _build_target_channels(targets, bsz, hh, ww)

        det_slabs.append(_pack_block_major(det_cn, block_rows))
        asp_slabs.append(_pack_block_major(asp_cn, block_rows))
        shp_slabs.append(_pack_block_major(shp_cn, block_rows))
        tgt_slabs.append(_pack_block_major(tgt_cn, block_rows))

    det_x = jnp.concatenate(det_slabs, axis=0)                 # (nb, 5, br, 128)
    asp_x = jnp.concatenate(asp_slabs, axis=0)[:, 0]           # (nb, br, 128)
    shp_x = jnp.concatenate(shp_slabs, axis=0)[:, 0]           # (nb, br, 128)
    tgt_x = jnp.concatenate(tgt_slabs, axis=0)                 # (nb, 6, br, 128)
    counts_x = jnp.asarray(counts, jnp.int32)
    num_blocks = det_x.shape[0]

    per_step_bytes = 13 * block_rows * 128 * 4 + 8 * 8 * 128 * 4
    vmem_limit = int(min(32 * 1024 * 1024, max(8 * 1024 * 1024, 6 * per_step_bytes)))

    partials = pl.pallas_call(
        _yolo_fused_kernel,
        out_shape=jax.ShapeDtypeStruct((num_blocks, 8, 8, 128), jnp.float32),
        grid_spec=pltpu.PrefetchScalarGridSpec(
            num_scalar_prefetch=1,
            grid=(num_blocks,),
            in_specs=[
                pl.BlockSpec((1, 5, block_rows, 128), lambda i, c: (i, 0, 0, 0)),
                pl.BlockSpec((1, block_rows, 128), lambda i, c: (i, 0, 0)),
                pl.BlockSpec((1, block_rows, 128), lambda i, c: (i, 0, 0)),
                pl.BlockSpec((1, 6, block_rows, 128), lambda i, c: (i, 0, 0, 0)),
            ],
            out_specs=pl.BlockSpec((1, 8, 8, 128), lambda i, c: (i, 0, 0, 0)),
        ),
        compiler_params=pltpu.CompilerParams(
            dimension_semantics=("parallel",),      # v7x: shard blocks on 2 TCs
            vmem_limit_bytes=vmem_limit),
    )(counts_x, det_x, asp_x, shp_x, tgt_x)

    loss_box = jnp.zeros((1,), jnp.float32)
    loss_obj = jnp.zeros((1,), jnp.float32)
    loss_aspect = jnp.zeros((1,), jnp.float32)
    loss_shape = jnp.zeros((1,), jnp.float32)

    blk = 0
    for si in range(n_scales):
        nblk = scale_blocks[si]
        s = jnp.sum(partials[blk:blk + nblk], axis=(0, 2, 3))   # (8,) per-scale sums
        blk += nblk
        pos_sum, neg_sum, n_pos, n_neg = s[0], s[1], s[2], s[3]
        shape_sum, asp_sum, box_sum, n_valid = s[4], s[5], s[6], s[7]

        has_pos = n_pos > 0
        obj_loss = (jnp.where(has_pos, pos_sum / jnp.maximum(n_pos, 1.0), 0.0)
                    + 0.05 * jnp.where(n_neg > 0,
                                       neg_sum / jnp.maximum(n_neg, 1.0), 0.0))
        shape_loss = shape_sum / jnp.maximum(n_valid, 1.0)
        box_loss = jnp.where(has_pos, box_sum / jnp.maximum(n_pos, 1.0), 0.0)
        aspect_loss = jnp.where(has_pos, asp_sum / jnp.maximum(n_pos, 1.0), 0.0)

        bw = BOX_WEIGHT * (P5_BOOST if si == 2 else 1.0)
        loss_box = loss_box + box_loss * bw
        loss_obj = loss_obj + obj_loss * OBJ_WEIGHT
        loss_aspect = loss_aspect + aspect_loss * ASPECT_WEIGHT
        loss_shape = loss_shape + shape_loss * SHAPE_CONF_WEIGHT

    total = loss_box + loss_obj + loss_aspect + loss_shape
    return {"total_loss": total, "box_loss": loss_box, "obj_loss": loss_obj,
            "aspect_loss": loss_aspect, "shape_conf_loss": loss_shape,
            # PyTorch returns .item(); under jit we return a 0-d array instead.
            "avg_loss": total[0]}


if __name__ == "__main__":
    key = jax.random.PRNGKey(0)
    ks = jax.random.split(key, 10)
    B = 2
    sizes = [16, 8, 4]          # feature maps for strides 8 / 16 / 32 (128px image)

    detections = [jax.random.normal(ks[i], (B, 5, s, s), jnp.float32)
                  for i, s in enumerate(sizes)]
    aspects = [jax.random.normal(ks[3 + i], (B, 1, s, s), jnp.float32)
               for i, s in enumerate(sizes)]
    shape_confs = [jax.random.normal(ks[6 + i], (B, 1, s, s), jnp.float32)
                   for i, s in enumerate(sizes)]

    # targets: [batch_idx, class, x, y, w, h] with normalized coordinates
    xywh = jax.random.uniform(ks[9], (4, 4), minval=0.1, maxval=0.9)
    targets = jnp.concatenate(
        [jnp.array([[0.0], [0.0], [1.0], [1.0]], jnp.float32),
         jnp.zeros((4, 1), jnp.float32),
         xywh.astype(jnp.float32)], axis=1)

    preds = {"detections": detections, "aspects": aspects,
             "shape_confidences": shape_confs}

    out = jax.jit(yolo_one_loss)(preds, targets)
    jax.block_until_ready(out["total_loss"])
    print("KERNEL_OK")
</pallas_src>

<mosaic_0001>
module attributes {stable_mosaic.version = 11 : i64} {
  func.func @_yolo_fused_kernel(%arg0: i32, %arg1: memref<3xi32, #tpu.memory_space<smem>>, %arg2: memref<1x5x8x128xf32, #tpu.memory_space<vmem>>, %arg3: memref<1x8x128xf32, #tpu.memory_space<vmem>>, %arg4: memref<1x8x128xf32, #tpu.memory_space<vmem>>, %arg5: memref<1x6x8x128xf32, #tpu.memory_space<vmem>>, %arg6: memref<1x8x8x128xf32, #tpu.memory_space<vmem>>) attributes {dimension_semantics = [#tpu.dimension_semantics<parallel>], iteration_bounds = array<i64: 3>, scalar_prefetch = 1 : i64, scratch_operands = 0 : i64, tpu.core_type = #tpu.core_type<tc>, window_params = [{transform_indices = @transform_0, window_bounds = array<i64: 1, 5, 8, 128>}, {transform_indices = @transform_1, window_bounds = array<i64: 1, 8, 128>}, {transform_indices = @transform_2, window_bounds = array<i64: 1, 8, 128>}, {transform_indices = @transform_3, window_bounds = array<i64: 1, 6, 8, 128>}, {transform_indices = @transform_4, window_bounds = array<i64: 1, 8, 8, 128>}]} {
    %c0 = arith.constant 0 : index
    %c0_0 = arith.constant 0 : index
    %c0_1 = arith.constant 0 : index
    %c0_2 = arith.constant 0 : index
    %0 = vector.load %arg2[%c0, %c0_0, %c0_1, %c0_2] : memref<1x5x8x128xf32, #tpu.memory_space<vmem>>, vector<1x1x8x128xf32>
    %1 = vector.shape_cast %0 : vector<1x1x8x128xf32> to vector<8x128xf32>
    %c0_3 = arith.constant 0 : index
    %c1 = arith.constant 1 : index
    %c0_4 = arith.constant 0 : index
    %c0_5 = arith.constant 0 : index
    %2 = vector.load %arg2[%c0_3, %c1, %c0_4, %c0_5] : memref<1x5x8x128xf32, #tpu.memory_space<vmem>>, vector<1x1x8x128xf32>
    %3 = vector.shape_cast %2 : vector<1x1x8x128xf32> to vector<8x128xf32>
    %c0_6 = arith.constant 0 : index
    %c2 = arith.constant 2 : index
    %c0_7 = arith.constant 0 : index
    %c0_8 = arith.constant 0 : index
    %4 = vector.load %arg2[%c0_6, %c2, %c0_7, %c0_8] : memref<1x5x8x128xf32, #tpu.memory_space<vmem>>, vector<1x1x8x128xf32>
    %5 = vector.shape_cast %4 : vector<1x1x8x128xf32> to vector<8x128xf32>
    %c0_9 = arith.constant 0 : index
    %c3 = arith.constant 3 : index
    %c0_10 = arith.constant 0 : index
    %c0_11 = arith.constant 0 : index
    %6 = vector.load %arg2[%c0_9, %c3, %c0_10, %c0_11] : memref<1x5x8x128xf32, #tpu.memory_space<vmem>>, vector<1x1x8x128xf32>
    %7 = vector.shape_cast %6 : vector<1x1x8x128xf32> to vector<8x128xf32>
    %c0_12 = arith.constant 0 : index
    %c4 = arith.constant 4 : index
    %c0_13 = arith.constant 0 : index
    %c0_14 = arith.constant 0 : index
    %8 = vector.load %arg2[%c0_12, %c4, %c0_13, %c0_14] : memref<1x5x8x128xf32, #tpu.memory_space<vmem>>, vector<1x1x8x128xf32>
    %9 = vector.shape_cast %8 : vector<1x1x8x128xf32> to vector<8x128xf32>
    %c0_15 = arith.constant 0 : index
    %c0_16 = arith.constant 0 : index
    %c0_17 = arith.constant 0 : index
    %10 = vector.load %arg3[%c0_15, %c0_16, %c0_17] : memref<1x8x128xf32, #tpu.memory_space<vmem>>, vector<1x8x128xf32>
    %11 = vector.shape_cast %10 : vector<1x8x128xf32> to vector<8x128xf32>
    %c0_18 = arith.constant 0 : index
    %c0_19 = arith.constant 0 : index
    %c0_20 = arith.constant 0 : index
    %12 = vector.load %arg4[%c0_18, %c0_19, %c0_20] : memref<1x8x128xf32, #tpu.memory_space<vmem>>, vector<1x8x128xf32>
    %13 = vector.shape_cast %12 : vector<1x8x128xf32> to vector<8x128xf32>
    %c0_21 = arith.constant 0 : index
    %c0_22 = arith.constant 0 : index
    %c0_23 = arith.constant 0 : index
    %c0_24 = arith.constant 0 : index
    %14 = vector.load %arg5[%c0_21, %c0_22, %c0_23, %c0_24] : memref<1x6x8x128xf32, #tpu.memory_space<vmem>>, vector<1x1x8x128xf32>
    %15 = vector.shape_cast %14 : vector<1x1x8x128xf32> to vector<8x128xf32>
    %c0_25 = arith.constant 0 : index
    %c1_26 = arith.constant 1 : index
    %c0_27 = arith.constant 0 : index
    %c0_28 = arith.constant 0 : index
    %16 = vector.load %arg5[%c0_25, %c1_26, %c0_27, %c0_28] : memref<1x6x8x128xf32, #tpu.memory_space<vmem>>, vector<1x1x8x128xf32>
    %17 = vector.shape_cast %16 : vector<1x1x8x128xf32> to vector<8x128xf32>
    %c0_29 = arith.constant 0 : index
    %c2_30 = arith.constant 2 : index
    %c0_31 = arith.constant 0 : index
    %c0_32 = arith.constant 0 : index
    %18 = vector.load %arg5[%c0_29, %c2_30, %c0_31, %c0_32] : memref<1x6x8x128xf32, #tpu.memory_space<vmem>>, vector<1x1x8x128xf32>
    %19 = vector.shape_cast %18 : vector<1x1x8x128xf32> to vector<8x128xf32>
    %c0_33 = arith.constant 0 : index
    %c3_34 = arith.constant 3 : index
    %c0_35 = arith.constant 0 : index
    %c0_36 = arith.constant 0 : index
    %20 = vector.load %arg5[%c0_33, %c3_34, %c0_35, %c0_36] : memref<1x6x8x128xf32, #tpu.memory_space<vmem>>, vector<1x1x8x128xf32>
    %21 = vector.shape_cast %20 : vector<1x1x8x128xf32> to vector<8x128xf32>
    %c0_37 = arith.constant 0 : index
    %c4_38 = arith.constant 4 : index
    %c0_39 = arith.constant 0 : index
    %c0_40 = arith.constant 0 : index
    %22 = vector.load %arg5[%c0_37, %c4_38, %c0_39, %c0_40] : memref<1x6x8x128xf32, #tpu.memory_space<vmem>>, vector<1x1x8x128xf32>
    %23 = vector.shape_cast %22 : vector<1x1x8x128xf32> to vector<8x128xf32>
    %c0_41 = arith.constant 0 : index
    %c5 = arith.constant 5 : index
    %c0_42 = arith.constant 0 : index
    %c0_43 = arith.constant 0 : index
    %24 = vector.load %arg5[%c0_41, %c5, %c0_42, %c0_43] : memref<1x6x8x128xf32, #tpu.memory_space<vmem>>, vector<1x1x8x128xf32>
    %25 = vector.shape_cast %24 : vector<1x1x8x128xf32> to vector<8x128xf32>
    %26 = arith.index_cast %arg0 : i32 to index
    %27 = memref.load %arg1[%26] : memref<3xi32, #tpu.memory_space<smem>>
    %28 = tpu.iota {dimensions = array<i32: 0>} : vector<8x128xi32>
    %c128_i32 = arith.constant 128 : i32
    %29 = vector.broadcast %c128_i32 : i32 to vector<8x128xi32>
    %30 = arith.muli %28, %29 : vector<8x128xi32>
    %31 = tpu.iota {dimensions = array<i32: 1>} : vector<8x128xi32>
    %32 = arith.addi %30, %31 : vector<8x128xi32>
    %33 = vector.broadcast %27 : i32 to vector<8x128xi32>
    %34 = arith.cmpi slt, %32, %33 : vector<8x128xi32>
    %cst = arith.constant 1.000000e+00 : f32
    %cst_44 = arith.constant 0.000000e+00 : f32
    %35 = vector.broadcast %cst : f32 to vector<8x128xf32>
    %36 = vector.broadcast %cst_44 : f32 to vector<8x128xf32>
    %37 = arith.select %34, %35, %36 : vector<8x128xi1>, vector<8x128xf32>
    %38 = arith.subf %37, %23 : vector<8x128xf32>
    %39 = math.absf %9 : vector<8x128xf32>
    %cst_45 = arith.constant 0.000000e+00 : f32
    %40 = vector.broadcast %cst_45 : f32 to vector<8x128xf32>
    %41 = arith.subf %40, %39 : vector<8x128xf32>
    %42 = math.exp %41 : vector<8x128xf32>
    %cst_46 = arith.constant 0.000000e+00 : f32
    %43 = vector.broadcast %cst_46 : f32 to vector<8x128xf32>
    %44 = arith.maximumf %9, %43 : vector<8x128xf32>
    %45 = arith.mulf %9, %23 : vector<8x128xf32>
    %46 = arith.subf %44, %45 : vector<8x128xf32>
    %cst_47 = arith.constant 1.000000e+00 : f32
    %47 = vector.broadcast %cst_47 : f32 to vector<8x128xf32>
    %48 = arith.addf %47, %42 : vector<8x128xf32>
    %49 = math.log %48 : vector<8x128xf32>
    %50 = arith.addf %46, %49 : vector<8x128xf32>
    %cst_48 = arith.constant 1.000000e+00 : f32
    %51 = vector.broadcast %cst_48 : f32 to vector<8x128xf32>
    %52 = arith.addf %51, %42 : vector<8x128xf32>
    %53 = tpu.reciprocal %52 {approx = true} : vector<8x128xf32> -> vector<8x128xf32>
    %cst_49 = arith.constant 0.000000e+00 : f32
    %54 = vector.broadcast %cst_49 : f32 to vector<8x128xf32>
    %55 = arith.cmpf oge, %9, %54 : vector<8x128xf32>
    %56 = arith.mulf %42, %53 : vector<8x128xf32>
    %57 = arith.select %55, %53, %56 : vector<8x128xi1>, vector<8x128xf32>
    %cst_50 = arith.constant 5.000000e-01 : f32
    %58 = vector.broadcast %cst_50 : f32 to vector<8x128xf32>
    %59 = arith.cmpf ogt, %23, %58 : vector<8x128xf32>
    %cst_51 = arith.constant 1.000000e+00 : f32
    %60 = vector.broadcast %cst_51 : f32 to vector<8x128xf32>
    %61 = arith.subf %60, %57 : vector<8x128xf32>
    %62 = arith.select %59, %57, %61 : vector<8x128xi1>, vector<8x128xf32>
    %cst_52 = arith.constant 1.000000e+00 : f32
    %63 = vector.broadcast %cst_52 : f32 to vector<8x128xf32>
    %64 = arith.subf %63, %62 : vector<8x128xf32>
    %cst_53 = arith.constant 0.000000e+00 : f32
    %65 = vector.broadcast %cst_53 : f32 to vector<8x128xf32>
    %66 = arith.maximumf %64, %65 : vector<8x128xf32>
    %cst_54 = arith.constant 2.500000e-01 : f32
    %67 = vector.broadcast %cst_54 : f32 to vector<8x128xf32>
    %68 = arith.mulf %67, %66 : vector<8x128xf32>
    %69 = math.sqrt %66 : vector<8x128xf32>
    %70 = arith.mulf %68, %69 : vector<8x128xf32>
    %71 = arith.mulf %70, %50 : vector<8x128xf32>
    %72 = math.absf %13 : vector<8x128xf32>
    %cst_55 = arith.constant 0.000000e+00 : f32
    %73 = vector.broadcast %cst_55 : f32 to vector<8x128xf32>
    %74 = arith.subf %73, %72 : vector<8x128xf32>
    %75 = math.exp %74 : vector<8x128xf32>
    %cst_56 = arith.constant 0.000000e+00 : f32
    %76 = vector.broadcast %cst_56 : f32 to vector<8x128xf32>
    %77 = arith.maximumf %13, %76 : vector<8x128xf32>
    %78 = arith.mulf %13, %23 : vector<8x128xf32>
    %79 = arith.subf %77, %78 : vector<8x128xf32>
    %cst_57 = arith.constant 1.000000e+00 : f32
    %80 = vector.broadcast %cst_57 : f32 to vector<8x128xf32>
    %81 = arith.addf %80, %75 : vector<8x128xf32>
    %82 = math.log %81 : vector<8x128xf32>
    %83 = arith.addf %79, %82 : vector<8x128xf32>
    %cst_58 = arith.constant 1.000000e+00 : f32
    %84 = vector.broadcast %cst_58 : f32 to vector<8x128xf32>
    %85 = arith.addf %84, %75 : vector<8x128xf32>
    %86 = tpu.reciprocal %85 {approx = true} : vector<8x128xf32> -> vector<8x128xf32>
    %cst_59 = arith.constant 0.000000e+00 : f32
    %87 = vector.broadcast %cst_59 : f32 to vector<8x128xf32>
    %88 = arith.cmpf oge, %13, %87 : vector<8x128xf32>
    %89 = arith.mulf %75, %86 : vector<8x128xf32>
    %90 = arith.select %88, %86, %89 : vector<8x128xi1>, vector<8x128xf32>
    %cst_60 = arith.constant 5.000000e-01 : f32
    %91 = vector.broadcast %cst_60 : f32 to vector<8x128xf32>
    %92 = arith.cmpf ogt, %23, %91 : vector<8x128xf32>
    %cst_61 = arith.constant 1.000000e+00 : f32
    %93 = vector.broadcast %cst_61 : f32 to vector<8x128xf32>
    %94 = arith.subf %93, %90 : vector<8x128xf32>
    %95 = arith.select %92, %90, %94 : vector<8x128xi1>, vector<8x128xf32>
    %cst_62 = arith.constant 1.000000e+00 : f32
    %96 = vector.broadcast %cst_62 : f32 to vector<8x128xf32>
    %97 = arith.subf %96, %95 : vector<8x128xf32>
    %cst_63 = arith.constant 0.000000e+00 : f32
    %98 = vector.broadcast %cst_63 : f32 to vector<8x128xf32>
    %99 = arith.maximumf %97, %98 : vector<8x128xf32>
    %cst_64 = arith.constant 2.500000e-01 : f32
    %100 = vector.broadcast %cst_64 : f32 to vector<8x128xf32>
    %101 = arith.mulf %100, %99 : vector<8x128xf32>
    %102 = math.sqrt %99 : vector<8x128xf32>
    %103 = arith.mulf %101, %102 : vector<8x128xf32>
    %104 = arith.mulf %103, %83 : vector<8x128xf32>
    %105 = arith.subf %11, %25 : vector<8x128xf32>
    %106 = arith.mulf %105, %105 : vector<8x128xf32>
    %107 = math.absf %1 : vector<8x128xf32>
    %cst_65 = arith.constant 0.000000e+00 : f32
    %108 = vector.broadcast %cst_65 : f32 to vector<8x128xf32>
    %109 = arith.subf %108, %107 : vector<8x128xf32>
    %110 = math.exp %109 : vector<8x128xf32>
    %cst_66 = arith.constant 1.000000e+00 : f32
    %111 = vector.broadcast %cst_66 : f32 to vector<8x128xf32>
    %112 = arith.addf %111, %110 : vector<8x128xf32>
    %cst_67 = arith.constant 1.000000e+00 : f32
    %113 = vector.broadcast %cst_67 : f32 to vector<8x128xf32>
    %114 = arith.divf %113, %112 : vector<8x128xf32>
    %cst_68 = arith.constant 0.000000e+00 : f32
    %115 = vector.broadcast %cst_68 : f32 to vector<8x128xf32>
    %116 = arith.cmpf oge, %1, %115 : vector<8x128xf32>
    %117 = arith.mulf %110, %114 : vector<8x128xf32>
    %118 = arith.select %116, %114, %117 : vector<8x128xi1>, vector<8x128xf32>
    %119 = math.absf %3 : vector<8x128xf32>
    %cst_69 = arith.constant 0.000000e+00 : f32
    %120 = vector.broadcast %cst_69 : f32 to vector<8x128xf32>
    %121 = arith.subf %120, %119 : vector<8x128xf32>
    %122 = math.exp %121 : vector<8x128xf32>
    %cst_70 = arith.constant 1.000000e+00 : f32
    %123 = vector.broadcast %cst_70 : f32 to vector<8x128xf32>
    %124 = arith.addf %123, %122 : vector<8x128xf32>
    %cst_71 = arith.constant 1.000000e+00 : f32
    %125 = vector.broadcast %cst_71 : f32 to vector<8x128xf32>
    %126 = arith.divf %125, %124 : vector<8x128xf32>
    %cst_72 = arith.constant 0.000000e+00 : f32
    %127 = vector.broadcast %cst_72 : f32 to vector<8x128xf32>
    %128 = arith.cmpf oge, %3, %127 : vector<8x128xf32>
    %129 = arith.mulf %122, %126 : vector<8x128xf32>
    %130 = arith.select %128, %126, %129 : vector<8x128xi1>, vector<8x128xf32>
    %131 = math.exp %5 : vector<8x128xf32>
    %132 = math.exp %7 : vector<8x128xf32>
    %cst_73 = arith.constant 5.000000e-01 : f32
    %133 = vector.broadcast %cst_73 : f32 to vector<8x128xf32>
    %134 = arith.mulf %133, %131 : vector<8x128xf32>
    %cst_74 = arith.constant 5.000000e-01 : f32
    %135 = vector.broadcast %cst_74 : f32 to vector<8x128xf32>
    %136 = arith.mulf %135, %132 : vector<8x128xf32>
    %cst_75 = arith.constant 5.000000e-01 : f32
    %137 = vector.broadcast %cst_75 : f32 to vector<8x128xf32>
    %138 = arith.mulf %137, %19 : vector<8x128xf32>
    %cst_76 = arith.constant 5.000000e-01 : f32
    %139 = vector.broadcast %cst_76 : f32 to vector<8x128xf32>
    %140 = arith.mulf %139, %21 : vector<8x128xf32>
    %141 = arith.subf %118, %134 : vector<8x128xf32>
    %142 = arith.addf %118, %134 : vector<8x128xf32>
    %143 = arith.subf %130, %136 : vector<8x128xf32>
    %144 = arith.addf %130, %136 : vector<8x128xf32>
    %145 = arith.subf %15, %138 : vector<8x128xf32>
    %146 = arith.addf %15, %138 : vector<8x128xf32>
    %147 = arith.subf %17, %140 : vector<8x128xf32>
    %148 = arith.addf %17, %140 : vector<8x128xf32>
    %149 = arith.minimumf %142, %146 : vector<8x128xf32>
    %150 = arith.maximumf %141, %145 : vector<8x128xf32>
    %151 = arith.subf %149, %150 : vector<8x128xf32>
    %cst_77 = arith.constant 0.000000e+00 : f32
    %152 = vector.broadcast %cst_77 : f32 to vector<8x128xf32>
    %153 = arith.maximumf %151, %152 : vector<8x128xf32>
    %154 = arith.minimumf %144, %148 : vector<8x128xf32>
    %155 = arith.maximumf %143, %147 : vector<8x128xf32>
    %156 = arith.subf %154, %155 : vector<8x128xf32>
    %cst_78 = arith.constant 0.000000e+00 : f32
    %157 = vector.broadcast %cst_78 : f32 to vector<8x128xf32>
    %158 = arith.maximumf %156, %157 : vector<8x128xf32>
    %159 = arith.mulf %153, %158 : vector<8x128xf32>
    %160 = arith.mulf %131, %132 : vector<8x128xf32>
    %161 = arith.mulf %19, %21 : vector<8x128xf32>
    %162 = arith.addf %160, %161 : vector<8x128xf32>
    %163 = arith.subf %162, %159 : vector<8x128xf32>
    %cst_79 = arith.constant 9.99999997E-7 : f32
    %164 = vector.broadcast %cst_79 : f32 to vector<8x128xf32>
    %165 = arith.maximumf %163, %164 : vector<8x128xf32>
    %166 = arith.divf %159, %165 : vector<8x128xf32>
    %167 = arith.maximumf %142, %146 : vector<8x128xf32>
    %168 = arith.minimumf %141, %145 : vector<8x128xf32>
    %169 = arith.subf %167, %168 : vector<8x128xf32>
    %170 = arith.maximumf %144, %148 : vector<8x128xf32>
    %171 = arith.minimumf %143, %147 : vector<8x128xf32>
    %172 = arith.subf %170, %171 : vector<8x128xf32>
    %173 = arith.mulf %169, %169 : vector<8x128xf32>
    %174 = arith.mulf %172, %172 : vector<8x128xf32>
    %175 = arith.addf %173, %174 : vector<8x128xf32>
    %176 = arith.subf %118, %15 : vector<8x128xf32>
    %177 = arith.subf %130, %17 : vector<8x128xf32>
    %178 = arith.mulf %176, %176 : vector<8x128xf32>
    %179 = arith.mulf %177, %177 : vector<8x128xf32>
    %180 = arith.addf %178, %179 : vector<8x128xf32>
    %cst_80 = arith.constant 9.99999997E-7 : f32
    %181 = vector.broadcast %cst_80 : f32 to vector<8x128xf32>
    %182 = arith.maximumf %21, %181 : vector<8x128xf32>
    %183 = arith.divf %19, %182 : vector<8x128xf32>
    %cst_81 = arith.constant 9.99999997E-7 : f32
    %184 = vector.broadcast %cst_81 : f32 to vector<8x128xf32>
    %185 = arith.maximumf %132, %184 : vector<8x128xf32>
    %186 = arith.divf %131, %185 : vector<8x128xf32>
    %187 = arith.subf %183, %186 : vector<8x128xf32>
    %188 = arith.mulf %183, %186 : vector<8x128xf32>
    %cst_82 = arith.constant 1.000000e+00 : f32
    %189 = vector.broadcast %cst_82 : f32 to vector<8x128xf32>
    %190 = arith.addf %189, %188 : vector<8x128xf32>
    %191 = arith.divf %187, %190 : vector<8x128xf32>
    %cst_83 = arith.constant 0.000000e+00 : f32
    %192 = vector.broadcast %cst_83 : f32 to vector<8x128xf32>
    %193 = arith.cmpf olt, %191, %192 : vector<8x128xf32>
    %cst_84 = arith.constant -1.000000e+00 : f32
    %cst_85 = arith.constant 1.000000e+00 : f32
    %194 = vector.broadcast %cst_84 : f32 to vector<8x128xf32>
    %195 = vector.broadcast %cst_85 : f32 to vector<8x128xf32>
    %196 = arith.select %193, %194, %195 : vector<8x128xi1>, vector<8x128xf32>
    %197 = math.absf %191 : vector<8x128xf32>
    %cst_86 = arith.constant 2.41421366 : f32
    %198 = vector.broadcast %cst_86 : f32 to vector<8x128xf32>
    %199 = arith.cmpf ogt, %197, %198 : vector<8x128xf32>
    %cst_87 = arith.constant dense<true> : vector<8x128xi1>
    %200 = arith.xori %199, %cst_87 : vector<8x128xi1>
    %cst_88 = arith.constant 0.414213568 : f32
    %201 = vector.broadcast %cst_88 : f32 to vector<8x128xf32>
    %202 = arith.cmpf ogt, %197, %201 : vector<8x128xf32>
    %203 = arith.andi %200, %202 : vector<8x128xi1>
    %cst_89 = arith.constant 0.785398185 : f32
    %cst_90 = arith.constant 0.000000e+00 : f32
    %204 = vector.broadcast %cst_89 : f32 to vector<8x128xf32>
    %205 = vector.broadcast %cst_90 : f32 to vector<8x128xf32>
    %206 = arith.select %203, %204, %205 : vector<8x128xi1>, vector<8x128xf32>
    %cst_91 = arith.constant 1.57079637 : f32
    %207 = vector.broadcast %cst_91 : f32 to vector<8x128xf32>
    %208 = arith.select %199, %207, %206 : vector<8x128xi1>, vector<8x128xf32>
    %cst_92 = arith.constant 1.000000e-30 : f32
    %209 = vector.broadcast %cst_92 : f32 to vector<8x128xf32>
    %210 = arith.maximumf %197, %209 : vector<8x128xf32>
    %cst_93 = arith.constant -1.000000e+00 : f32
    %211 = vector.broadcast %cst_93 : f32 to vector<8x128xf32>
    %212 = arith.divf %211, %210 : vector<8x128xf32>
    %cst_94 = arith.constant 1.000000e+00 : f32
    %213 = vector.broadcast %cst_94 : f32 to vector<8x128xf32>
    %214 = arith.subf %197, %213 : vector<8x128xf32>
    %cst_95 = arith.constant 1.000000e+00 : f32
    %215 = vector.broadcast %cst_95 : f32 to vector<8x128xf32>
    %216 = arith.addf %197, %215 : vector<8x128xf32>
    %217 = arith.divf %214, %216 : vector<8x128xf32>
    %218 = arith.select %203, %217, %197 : vector<8x128xi1>, vector<8x128xf32>
    %219 = arith.select %199, %212, %218 : vector<8x128xi1>, vector<8x128xf32>
    %220 = arith.mulf %219, %219 : vector<8x128xf32>
    %cst_96 = arith.constant 0.0805374458 : f32
    %221 = vector.broadcast %cst_96 : f32 to vector<8x128xf32>
    %222 = arith.mulf %221, %220 : vector<8x128xf32>
    %cst_97 = arith.constant 0.138776854 : f32
    %223 = vector.broadcast %cst_97 : f32 to vector<8x128xf32>
    %224 = arith.subf %222, %223 : vector<8x128xf32>
    %225 = arith.mulf %224, %220 : vector<8x128xf32>
    %cst_98 = arith.constant 0.199777111 : f32
    %226 = vector.broadcast %cst_98 : f32 to vector<8x128xf32>
    %227 = arith.addf %225, %226 : vector<8x128xf32>
    %228 = arith.mulf %227, %220 : vector<8x128xf32>
    %cst_99 = arith.constant 0.333329499 : f32
    %229 = vector.broadcast %cst_99 : f32 to vector<8x128xf32>
    %230 = arith.subf %228, %229 : vector<8x128xf32>
    %231 = arith.mulf %230, %220 : vector<8x128xf32>
    %232 = arith.mulf %231, %219 : vector<8x128xf32>
    %233 = arith.addf %232, %219 : vector<8x128xf32>
    %234 = arith.addf %208, %233 : vector<8x128xf32>
    %235 = arith.mulf %196, %234 : vector<8x128xf32>
    %cst_100 = arith.constant 0.405284733 : f32
    %236 = vector.broadcast %cst_100 : f32 to vector<8x128xf32>
    %237 = arith.mulf %236, %235 : vector<8x128xf32>
    %238 = arith.mulf %237, %235 : vector<8x128xf32>
    %cst_101 = arith.constant 1.000000e+00 : f32
    %239 = vector.broadcast %cst_101 : f32 to vector<8x128xf32>
    %240 = arith.subf %239, %166 : vector<8x128xf32>
    %241 = arith.addf %240, %238 : vector<8x128xf32>
    %cst_102 = arith.constant 9.99999997E-7 : f32
    %242 = vector.broadcast %cst_102 : f32 to vector<8x128xf32>
    %243 = arith.maximumf %241, %242 : vector<8x128xf32>
    %244 = arith.divf %238, %243 : vector<8x128xf32>
    %cst_103 = arith.constant 9.99999997E-7 : f32
    %245 = vector.broadcast %cst_103 : f32 to vector<8x128xf32>
    %246 = arith.maximumf %175, %245 : vector<8x128xf32>
    %247 = arith.divf %180, %246 : vector<8x128xf32>
    %248 = arith.subf %166, %247 : vector<8x128xf32>
    %249 = arith.mulf %244, %238 : vector<8x128xf32>
    %250 = arith.subf %248, %249 : vector<8x128xf32>
    %cst_104 = arith.constant 1.000000e+00 : f32
    %251 = vector.broadcast %cst_104 : f32 to vector<8x128xf32>
    %252 = arith.subf %251, %250 : vector<8x128xf32>
    %253 = arith.mulf %71, %23 : vector<8x128xf32>
    %254 = vector.shape_cast %253 : vector<8x128xf32> to vector<1x8x128xf32>
    %cst_105 = arith.constant dense<0.000000e+00> : vector<8x128xf32>
    %255 = vector.multi_reduction <add>, %254, %cst_105 [0] : vector<1x8x128xf32> to vector<8x128xf32>
    %c0_106 = arith.constant 0 : index
    %c0_107 = arith.constant 0 : index
    %c0_108 = arith.constant 0 : index
    %c0_109 = arith.constant 0 : index
    %256 = vector.load %arg6[%c0_106, %c0_107, %c0_108, %c0_109] : memref<1x8x8x128xf32, #tpu.memory_space<vmem>>, vector<1x1x8x128xf32>
    %257 = vector.shape_cast %256 : vector<1x1x8x128xf32> to vector<8x128xf32>
    %258 = vector.shape_cast %255 : vector<8x128xf32> to vector<1x1x8x128xf32>
    tpu.vector_store %arg6[%c0_106, %c0_107, %c0_108, %c0_109], %258 {strides = array<i32>} : memref<1x8x8x128xf32, #tpu.memory_space<vmem>>, vector<1x1x8x128xf32>,
    %259 = arith.mulf %71, %38 : vector<8x128xf32>
    %260 = vector.shape_cast %259 : vector<8x128xf32> to vector<1x8x128xf32>
    %cst_110 = arith.constant dense<0.000000e+00> : vector<8x128xf32>
    %261 = vector.multi_reduction <add>, %260, %cst_110 [0] : vector<1x8x128xf32> to vector<8x128xf32>
    %c0_111 = arith.constant 0 : index
    %c1_112 = arith.constant 1 : index
    %c0_113 = arith.constant 0 : index
    %c0_114 = arith.constant 0 : index
    %262 = vector.load %arg6[%c0_111, %c1_112, %c0_113, %c0_114] : memref<1x8x8x128xf32, #tpu.memory_space<vmem>>, vector<1x1x8x128xf32>
    %263 = vector.shape_cast %262 : vector<1x1x8x128xf32> to vector<8x128xf32>
    %264 = vector.shape_cast %261 : vector<8x128xf32> to vector<1x1x8x128xf32>
    tpu.vector_store %arg6[%c0_111, %c1_112, %c0_113, %c0_114], %264 {strides = array<i32>} : memref<1x8x8x128xf32, #tpu.memory_space<vmem>>, vector<1x1x8x128xf32>,
    %265 = vector.shape_cast %23 : vector<8x128xf32> to vector<1x8x128xf32>
    %cst_115 = arith.constant dense<0.000000e+00> : vector<8x128xf32>
    %266 = vector.multi_reduction <add>, %265, %cst_115 [0] : vector<1x8x128xf32> to vector<8x128xf32>
    %c0_116 = arith.constant 0 : index
    %c2_117 = arith.constant 2 : index
    %c0_118 = arith.constant 0 : index
    %c0_119 = arith.constant 0 : index
    %267 = vector.load %arg6[%c0_116, %c2_117, %c0_118, %c0_119] : memref<1x8x8x128xf32, #tpu.memory_space<vmem>>, vector<1x1x8x128xf32>
    %268 = vector.shape_cast %267 : vector<1x1x8x128xf32> to vector<8x128xf32>
    %269 = vector.shape_cast %266 : vector<8x128xf32> to vector<1x1x8x128xf32>
    tpu.vector_store %arg6[%c0_116, %c2_117, %c0_118, %c0_119], %269 {strides = array<i32>} : memref<1x8x8x128xf32, #tpu.memory_space<vmem>>, vector<1x1x8x128xf32>,
    %270 = vector.shape_cast %38 : vector<8x128xf32> to vector<1x8x128xf32>
    %cst_120 = arith.constant dense<0.000000e+00> : vector<8x128xf32>
    %271 = vector.multi_reduction <add>, %270, %cst_120 [0] : vector<1x8x128xf32> to vector<8x128xf32>
    %c0_121 = arith.constant 0 : index
    %c3_122 = arith.constant 3 : index
    %c0_123 = arith.constant 0 : index
    %c0_124 = arith.constant 0 : index
    %272 = vector.load %arg6[%c0_121, %c3_122, %c0_123, %c0_124] : memref<1x8x8x128xf32, #tpu.memory_space<vmem>>, vector<1x1x8x128xf32>
    %273 = vector.shape_cast %272 : vector<1x1x8x128xf32> to vector<8x128xf32>
    %274 = vector.shape_cast %271 : vector<8x128xf32> to vector<1x1x8x128xf32>
    tpu.vector_store %arg6[%c0_121, %c3_122, %c0_123, %c0_124], %274 {strides = array<i32>} : memref<1x8x8x128xf32, #tpu.memory_space<vmem>>, vector<1x1x8x128xf32>,
    %275 = arith.mulf %104, %37 : vector<8x128xf32>
    %276 = vector.shape_cast %275 : vector<8x128xf32> to vector<1x8x128xf32>
    %cst_125 = arith.constant dense<0.000000e+00> : vector<8x128xf32>
    %277 = vector.multi_reduction <add>, %276, %cst_125 [0] : vector<1x8x128xf32> to vector<8x128xf32>
    %c0_126 = arith.constant 0 : index
    %c4_127 = arith.constant 4 : index
    %c0_128 = arith.constant 0 : index
    %c0_129 = arith.constant 0 : index
    %278 = vector.load %arg6[%c0_126, %c4_127, %c0_128, %c0_129] : memref<1x8x8x128xf32, #tpu.memory_space<vmem>>, vector<1x1x8x128xf32>
    %279 = vector.shape_cast %278 : vector<1x1x8x128xf32> to vector<8x128xf32>
    %280 = vector.shape_cast %277 : vector<8x128xf32> to vector<1x1x8x128xf32>
    tpu.vector_store %arg6[%c0_126, %c4_127, %c0_128, %c0_129], %280 {strides = array<i32>} : memref<1x8x8x128xf32, #tpu.memory_space<vmem>>, vector<1x1x8x128xf32>,
    %281 = arith.mulf %106, %23 : vector<8x128xf32>
    %282 = vector.shape_cast %281 : vector<8x128xf32> to vector<1x8x128xf32>
    %cst_130 = arith.constant dense<0.000000e+00> : vector<8x128xf32>
    %283 = vector.multi_reduction <add>, %282, %cst_130 [0] : vector<1x8x128xf32> to vector<8x128xf32>
    %c0_131 = arith.constant 0 : index
    %c5_132 = arith.constant 5 : index
    %c0_133 = arith.constant 0 : index
    %c0_134 = arith.constant 0 : index
    %284 = vector.load %arg6[%c0_131, %c5_132, %c0_133, %c0_134] : memref<1x8x8x128xf32, #tpu.memory_space<vmem>>, vector<1x1x8x128xf32>
    %285 = vector.shape_cast %284 : vector<1x1x8x128xf32> to vector<8x128xf32>
    %286 = vector.shape_cast %283 : vector<8x128xf32> to vector<1x1x8x128xf32>
    tpu.vector_store %arg6[%c0_131, %c5_132, %c0_133, %c0_134], %286 {strides = array<i32>} : memref<1x8x8x128xf32, #tpu.memory_space<vmem>>, vector<1x1x8x128xf32>,
    %287 = arith.mulf %252, %23 : vector<8x128xf32>
    %288 = vector.shape_cast %287 : vector<8x128xf32> to vector<1x8x128xf32>
    %cst_135 = arith.constant dense<0.000000e+00> : vector<8x128xf32>
    %289 = vector.multi_reduction <add>, %288, %cst_135 [0] : vector<1x8x128xf32> to vector<8x128xf32>
    %c0_136 = arith.constant 0 : index
    %c6 = arith.constant 6 : index
    %c0_137 = arith.constant 0 : index
    %c0_138 = arith.constant 0 : index
    %290 = vector.load %arg6[%c0_136, %c6, %c0_137, %c0_138] : memref<1x8x8x128xf32, #tpu.memory_space<vmem>>, vector<1x1x8x128xf32>
    %291 = vector.shape_cast %290 : vector<1x1x8x128xf32> to vector<8x128xf32>
    %292 = vector.shape_cast %289 : vector<8x128xf32> to vector<1x1x8x128xf32>
    tpu.vector_store %arg6[%c0_136, %c6, %c0_137, %c0_138], %292 {strides = array<i32>} : memref<1x8x8x128xf32, #tpu.memory_space<vmem>>, vector<1x1x8x128xf32>,
    %293 = vector.shape_cast %37 : vector<8x128xf32> to vector<1x8x128xf32>
    %cst_139 = arith.constant dense<0.000000e+00> : vector<8x128xf32>
    %294 = vector.multi_reduction <add>, %293, %cst_139 [0] : vector<1x8x128xf32> to vector<8x128xf32>
    %c0_140 = arith.constant 0 : index
    %c7 = arith.constant 7 : index
    %c0_141 = arith.constant 0 : index
    %c0_142 = arith.constant 0 : index
    %295 = vector.load %arg6[%c0_140, %c7, %c0_141, %c0_142] : memref<1x8x8x128xf32, #tpu.memory_space<vmem>>, vector<1x1x8x128xf32>
    %296 = vector.shape_cast %295 : vector<1x1x8x128xf32> to vector<8x128xf32>
    %297 = vector.shape_cast %294 : vector<8x128xf32> to vector<1x1x8x128xf32>
    tpu.vector_store %arg6[%c0_140, %c7, %c0_141, %c0_142], %297 {strides = array<i32>} : memref<1x8x8x128xf32, #tpu.memory_space<vmem>>, vector<1x1x8x128xf32>,
    return
  }
  func.func @transform_0(%arg0: i32, %arg1: memref<3xi32, #tpu.memory_space<smem>>) -> (i32, i32, i32, i32) {
    %c0_i32 = arith.constant 0 : i32
    %c0_i32_0 = arith.constant 0 : i32
    %c0_i32_1 = arith.constant 0 : i32
    %c0_i32_2 = arith.constant 0 : i32
    return %arg0, %c0_i32, %c0_i32_0, %c0_i32_1 : i32, i32, i32, i32
  }
  func.func @transform_1(%arg0: i32, %arg1: memref<3xi32, #tpu.memory_space<smem>>) -> (i32, i32, i32) {
    %c0_i32 = arith.constant 0 : i32
    %c0_i32_0 = arith.constant 0 : i32
    %c0_i32_1 = arith.constant 0 : i32
    return %arg0, %c0_i32, %c0_i32_0 : i32, i32, i32
  }
  func.func @transform_2(%arg0: i32, %arg1: memref<3xi32, #tpu.memory_space<smem>>) -> (i32, i32, i32) {
    %c0_i32 = arith.constant 0 : i32
    %c0_i32_0 = arith.constant 0 : i32
    %c0_i32_1 = arith.constant 0 : i32
    return %arg0, %c0_i32, %c0_i32_0 : i32, i32, i32
  }
  func.func @transform_3(%arg0: i32, %arg1: memref<3xi32, #tpu.memory_space<smem>>) -> (i32, i32, i32, i32) {
    %c0_i32 = arith.constant 0 : i32
    %c0_i32_0 = arith.constant 0 : i32
    %c0_i32_1 = arith.constant 0 : i32
    %c0_i32_2 = arith.constant 0 : i32
    return %arg0, %c0_i32, %c0_i32_0, %c0_i32_1 : i32, i32, i32, i32
  }
  func.func @transform_4(%arg0: i32, %arg1: memref<3xi32, #tpu.memory_space<smem>>) -> (i32, i32, i32, i32) {
    %c0_i32 = arith.constant 0 : i32
    %c0_i32_0 = arith.constant 0 : i32
    %c0_i32_1 = arith.constant 0 : i32
    %c0_i32_2 = arith.constant 0 : i32
    return %arg0, %c0_i32, %c0_i32_0, %c0_i32_1 : i32, i32, i32, i32
  }
}

</mosaic_0001>

<llo_original>
// kernel: yolo_one_loss.1
$region0: #{yolo_one_loss.1}
  #allocation0 [shape = 'u32[]', space=smem, size = 0x4, offset = 0x4, fixed_abs, tag = 'smem constant byte address 0x4 - core index']
  #allocation1 [shape = 'u32[72,128]{1,0:T(1,128)}', space=vmem, size = 0x9000, scoped, tag = 'internal scratch']
  #allocation2 [shape = 's32[1]{0}', space=sflag, size = 0x4, scoped, tag = 'scoped memory for yolo_one_loss.1']
  #allocation3 [shape = 'u8[512]{0}', space=smem, size = 0x200, scoped, tag = 'prefetched SMEM operand 0']
  %s0 = inlined_call_operand.vmem [shape: s32[3], index: 0, kind: input, shape index: {}]
  %s1 = inlined_call_operand.vmem [shape: f32[3,5,8,128], index: 1, kind: input, shape index: {}]
  %s2 = inlined_call_operand.vmem [shape: f32[3,8,128], index: 2, kind: input, shape index: {}]
  %s3 = inlined_call_operand.vmem [shape: f32[3,8,128], index: 3, kind: input, shape index: {}]
  %s4 = inlined_call_operand.vmem [shape: f32[3,6,8,128], index: 4, kind: input, shape index: {}]
  %s5 = inlined_call_operand.vmem [shape: f32[3,8,8,128], index: 5, kind: output, shape index: {}]
  %s6 = sld [smem:[#allocation0]]
  $region49: #{yolo_one_loss.1} parent=0
    _
  %s8 = ssub.s32 1, %s6
  %s9 = scalar_select 0, %s8, %s6
  %s11 = sshll.u32 %s0, 4
  %s12 = int_to_ptr.vmem [resolvable:$true] %s11
  %14 = dma.vmem_to_smem %s12, 16, [#allocation3], [#allocation2]
  %16 = dma.done [#allocation2], 16
  %17 = sfence
  loop: start=0, step=1, limit=5
  $region2: #{yolo_one_loss.1} parent=0 // loop_pre_header
    _
  $region3: #{yolo_one_loss.1} parent=0 // loop_header
    %s19 = sphi 0, %s23
    %p20 = scmp.ge.s32.totalorder %s19, 5
    %s29 = sphi 0, %s31
    %s32 = sphi 0, %s29
    %s33 = sphi 0, %s32
    %s49 = sphi 0, %s33
    %s55 = sphi 0, %s57
    %s58 = sphi 0, %s55
    %s59 = sphi 0, %s58
    %s75 = sphi 0, %s59
    %s81 = sphi 0, %s83
    %s84 = sphi 0, %s81
    %s85 = sphi 0, %s84
    %s101 = sphi 0, %s85
    %s107 = sphi 0, %s109
    %s110 = sphi 0, %s107
    %s111 = sphi 0, %s110
    %s127 = sphi 0, %s111
    %s133 = sphi 0, %s135
    %s136 = sphi 0, %s133
    %s137 = sphi 0, %s136
    %s153 = sphi 0, %s137
  $region4: #{yolo_one_loss.1} parent=0 // loop_header_branch
    %22 = sbr.rel (%p20) target = $region8
  $region5: #{yolo_one_loss.1} parent=0 // loop_body
    %s24 = ssub.s32 %s19, 1
    %s25 = ssub.s32 %s19, 2
    %s26 = sadd.s32 %s19, 1
    %s27 = ssub.s32 %s19, %s26
    %p28 = scmp.eq.s32.totalorder %s27, 0
    %s30 = sadd.s32 %s29, 1
    %s31 = scalar_select %p28, %s29, %s30
    %p34 = pneg %p28
    %p35 = scmp.eq.s32.totalorder %s19, 2
    %p36 = por %p34, %p35
    %p37 = scmp.ne.s32.totalorder %s29, %s32
    %p38 = scmp.eq.s32.totalorder %s19, 0
    %p39 = por %p37, %p38
    %p40 = scmp.ne.s32.totalorder %s29, %s32
    %p41 = scmp.eq.s32.totalorder %s24, 2
    %p42 = por %p40, %p41
    %p43 = scmp.ne.s32.totalorder %s32, %s33
    %p44 = scmp.eq.s32.totalorder %s24, 0
    %p45 = por %p43, %p44
    %p46 = scmp.ne.s32.totalorder %s32, %s33
    %p47 = scmp.eq.s32.totalorder %s25, 2
    %p48 = por %p46, %p47
    %p50 = scmp.ne.s32.totalorder %s33, %s49
    %p51 = scmp.eq.s32.totalorder %s25, 0
    %p52 = por %p50, %p51
    %s53 = ssub.s32 %s19, %s26
    %p54 = scmp.eq.s32.totalorder %s53, 0
    %s56 = sadd.s32 %s55, 1
    %s57 = scalar_select %p54, %s55, %s56
    %p60 = pneg %p54
    %p61 = scmp.eq.s32.totalorder %s19, 2
    %p62 = por %p60, %p61
    %p63 = scmp.ne.s32.totalorder %s55, %s58
    %p64 = scmp.eq.s32.totalorder %s19, 0
    %p65 = por %p63, %p64
    %p66 = scmp.ne.s32.totalorder %s55, %s58
    %p67 = scmp.eq.s32.totalorder %s24, 2
    %p68 = por %p66, %p67
    %p69 = scmp.ne.s32.totalorder %s58, %s59
    %p70 = scmp.eq.s32.totalorder %s24, 0
    %p71 = por %p69, %p70
    %p72 = scmp.ne.s32.totalorder %s58, %s59
    %p73 = scmp.eq.s32.totalorder %s25, 2
    %p74 = por %p72, %p73
    %p76 = scmp.ne.s32.totalorder %s59, %s75
    %p77 = scmp.eq.s32.totalorder %s25, 0
    %p78 = por %p76, %p77
    %s79 = ssub.s32 %s19, %s26
    %p80 = scmp.eq.s32.totalorder %s79, 0
    %s82 = sadd.s32 %s81, 1
    %s83 = scalar_select %p80, %s81, %s82
    %p86 = pneg %p80
    %p87 = scmp.eq.s32.totalorder %s19, 2
    %p88 = por %p86, %p87
    %p89 = scmp.ne.s32.totalorder %s81, %s84
    %p90 = scmp.eq.s32.totalorder %s19, 0
    %p91 = por %p89, %p90
    %p92 = scmp.ne.s32.totalorder %s81, %s84
    %p93 = scmp.eq.s32.totalorder %s24, 2
    %p94 = por %p92, %p93
    %p95 = scmp.ne.s32.totalorder %s84, %s85
    %p96 = scmp.eq.s32.totalorder %s24, 0
    %p97 = por %p95, %p96
    %p98 = scmp.ne.s32.totalorder %s84, %s85
    %p99 = scmp.eq.s32.totalorder %s25, 2
    %p100 = por %p98, %p99
    %p102 = scmp.ne.s32.totalorder %s85, %s101
    %p103 = scmp.eq.s32.totalorder %s25, 0
    %p104 = por %p102, %p103
    %s105 = ssub.s32 %s19, %s26
    %p106 = scmp.eq.s32.totalorder %s105, 0
    %s108 = sadd.s32 %s107, 1
    %s109 = scalar_select %p106, %s107, %s108
    %p112 = pneg %p106
    %p113 = scmp.eq.s32.totalorder %s19, 2
    %p114 = por %p112, %p113
    %p115 = scmp.ne.s32.totalorder %s107, %s110
    %p116 = scmp.eq.s32.totalorder %s19, 0
    %p117 = por %p115, %p116
    %p118 = scmp.ne.s32.totalorder %s107, %s110
    %p119 = scmp.eq.s32.totalorder %s24, 2
    %p120 = por %p118, %p119
    %p121 = scmp.ne.s32.totalorder %s110, %s111
    %p122 = scmp.eq.s32.totalorder %s24, 0
    %p123 = por %p121, %p122
    %p124 = scmp.ne.s32.totalorder %s110, %s111
    %p125 = scmp.eq.s32.totalorder %s25, 2
    %p126 = por %p124, %p125
    %p128 = scmp.ne.s32.totalorder %s111, %s127
    %p129 = scmp.eq.s32.totalorder %s25, 0
    %p130 = por %p128, %p129
    %s131 = ssub.s32 %s19, %s26
    %p132 = scmp.eq.s32.totalorder %s131, 0
    %s134 = sadd.s32 %s133, 1
    %s135 = scalar_select %p132, %s133, %s134
    %p138 = pneg %p132
    %p139 = scmp.eq.s32.totalorder %s19, 2
    %p140 = por %p138, %p139
    %p141 = scmp.ne.s32.totalorder %s133, %s136
    %p142 = scmp.eq.s32.totalorder %s19, 0
    %p143 = por %p141, %p142
    %p144 = scmp.ne.s32.totalorder %s133, %s136
    %p145 = scmp.eq.s32.totalorder %s24, 2
    %p146 = por %p144, %p145
    %p147 = scmp.ne.s32.totalorder %s136, %s137
    %p148 = scmp.eq.s32.totalorder %s24, 0
    %p149 = por %p147, %p148
    %p150 = scmp.ne.s32.totalorder %s136, %s137
    %p151 = scmp.eq.s32.totalorder %s25, 2
    %p152 = por %p150, %p151
    %p154 = scmp.ne.s32.totalorder %s137, %s153
    %p155 = scmp.eq.s32.totalorder %s25, 0
    %p156 = por %p154, %p155
    %p157 = scmp.le.s32.totalorder 1, %s19
    %p158 = scmp.lt.s32.totalorder %s19, 4
    %p159 = pnand %p157, %p158
    %p160 = pneg %p159
    // Predicated region
    $region9: #{yolo_one_loss.1} parent=5 // pred_check
      _
    $region10: #{yolo_one_loss.1} parent=5 // pred_check_branch
      %162 = sbr.rel (%p159) target = $region12
    $region11: #{yolo_one_loss.1} parent=5 // pred_region
      %s163 = ssub.s32 %s19, 1
    $region12: #{yolo_one_loss.1} parent=5 // pred_fallthru
      _
    %p164 = scmp.lt.s32.totalorder %s19, 3
    // Predicated region
    $region13: #{yolo_one_loss.1} parent=5 // pred_check
      %p165 = pneg %p164
    $region14: #{yolo_one_loss.1} parent=5 // pred_check_branch
      %167 = sbr.rel (%p165) target = $region16
    $region15: #{yolo_one_loss.1} parent=5 // pred_region
      // Predicated region
      $region17: #{yolo_one_loss.1} parent=15 // pred_check
        %p168 = pneg %p39
      $region18: #{yolo_one_loss.1} parent=15 // pred_check_branch
        %170 = sbr.rel (%p168) target = $region20
      $region19: #{yolo_one_loss.1} parent=15 // pred_region
        %p171 = scmp.lt.s32.totalorder %s19, 2
        %s172 = scalar_select %p171, %s19, 2
        %s173 = smul.addr %s172, 5
        %s174 = smul.addr %s173, 8
        %s175 = scalar_lea.vmem %s1, %s174
      $region20: #{yolo_one_loss.1} parent=15 // pred_fallthru
        _
      // Predicated region
      $region21: #{yolo_one_loss.1} parent=15 // pred_check
        %p176 = pneg %p65
      $region22: #{yolo_one_loss.1} parent=15 // pred_check_branch
        %178 = sbr.rel (%p176) target = $region24
      $region23: #{yolo_one_loss.1} parent=15 // pred_region
        %p179 = scmp.lt.s32.totalorder %s19, 2
        %s180 = scalar_select %p179, %s19, 2
        %s181 = smul.addr %s180, 8
        %s182 = scalar_lea.vmem %s2, %s181
      $region24: #{yolo_one_loss.1} parent=15 // pred_fallthru
        _
      // Predicated region
      $region25: #{yolo_one_loss.1} parent=15 // pred_check
        %p183 = pneg %p91
      $region26: #{yolo_one_loss.1} parent=15 // pred_check_branch
        %185 = sbr.rel (%p183) target = $region28
      $region27: #{yolo_one_loss.1} parent=15 // pred_region
        %p186 = scmp.lt.s32.totalorder %s19, 2
        %s187 = scalar_select %p186, %s19, 2
        %s188 = smul.addr %s187, 8
        %s189 = scalar_lea.vmem %s3, %s188
      $region28: #{yolo_one_loss.1} parent=15 // pred_fallthru
        _
      // Predicated region
      $region29: #{yolo_one_loss.1} parent=15 // pred_check
        %p190 = pneg %p117
      $region30: #{yolo_one_loss.1} parent=15 // pred_check_branch
        %192 = sbr.rel (%p190) target = $region32
      $region31: #{yolo_one_loss.1} parent=15 // pred_region
        %p193 = scmp.lt.s32.totalorder %s19, 2
        %s194 = scalar_select %p193, %s19, 2
        %s195 = smul.addr %s194, 6
        %s196 = smul.addr %s195, 8
        %s197 = scalar_lea.vmem %s4, %s196
      $region32: #{yolo_one_loss.1} parent=15 // pred_fallthru
        _
    $region16: #{yolo_one_loss.1} parent=5 // pred_fallthru
      _
    %p198 = scmp.le.s32.totalorder 1, %s19
    %p199 = scmp.lt.s32.totalorder %s19, 4
    %p200 = pnand %p198, %p199
    %p201 = pneg %p200
    // Predicated region
    $region33: #{yolo_one_loss.1} parent=5 // pred_check
      _
    $region34: #{yolo_one_loss.1} parent=5 // pred_check_branch
      %203 = sbr.rel (%p200) target = $region36
    $region35: #{yolo_one_loss.1} parent=5 // pred_region
      %s204 = ssub.s32 %s19, 1
      %p205 = scmp.lt.s32.totalorder %s24, 2
      %s206 = scalar_select %p205, %s24, 2
      %s207 = smul.addr %s206, 5
      %s208 = smul.addr %s207, 8
      %s209 = scalar_lea.vmem %s1, %s208
      %p210 = pneg %p45
      %p211 = pneg %p42
      %p212 = scmp.lt.s32.totalorder %s24, 2
      %s213 = scalar_select %p212, %s24, 2
      %s214 = smul.addr %s213, 8
      %s215 = scalar_lea.vmem %s2, %s214
      %p216 = pneg %p71
      %p217 = pneg %p68
      %p218 = scmp.lt.s32.totalorder %s24, 2
      %s219 = scalar_select %p218, %s24, 2
      %s220 = smul.addr %s219, 8
      %s221 = scalar_lea.vmem %s3, %s220
      %p222 = pneg %p97
      %p223 = pneg %p94
      %p224 = scmp.lt.s32.totalorder %s24, 2
      %s225 = scalar_select %p224, %s24, 2
      %s226 = smul.addr %s225, 6
      %s227 = smul.addr %s226, 8
      %s228 = scalar_lea.vmem %s4, %s227
      %p229 = pneg %p123
      %p230 = pneg %p120
      %p231 = pneg %p149
      %p232 = pneg %p146
      %p233 = scmp.lt.s32.totalorder %s24, 2
      %s234 = scalar_select %p233, %s24, 2
      %s235 = smul.addr %s234, 8
      %s236 = smul.addr %s235, 8
      %s237 = scalar_lea.vmem %s5, %s236
      %p238 = scmp.lt.s32.totalorder %s24, 2
      %s239 = scalar_select %p238, %s24, 2
      %s240 = smul.addr %s239, 5
      %s241 = smul.addr %s240, 8
      %s242 = scalar_lea.vmem %s1, %s241
      %p243 = scmp.lt.s32.totalorder %s24, 2
      %s244 = scalar_select %p243, %s24, 2
      %s245 = smul.addr %s244, 8
      %s246 = scalar_lea.vmem %s2, %s245
      %p247 = scmp.lt.s32.totalorder %s24, 2
      %s248 = scalar_select %p247, %s24, 2
      %s249 = smul.addr %s248, 8
      %s250 = scalar_lea.vmem %s3, %s249
      %p251 = scmp.lt.s32.totalorder %s24, 2
      %s252 = scalar_select %p251, %s24, 2
      %s253 = smul.addr %s252, 6
      %s254 = smul.addr %s253, 8
      %s255 = scalar_lea.vmem %s4, %s254
      %p256 = scmp.lt.s32.totalorder %s24, 2
      %s257 = scalar_select %p256, %s24, 2
      %s258 = smul.addr %s257, 8
      %s259 = smul.addr %s258, 8
      %s260 = scalar_lea.vmem %s5, %s259
      %v261 = vld [vmem:[%s242] sm:$0xff]
      %s262 = scalar_lea.vmem %s242, 8
      %v263 = vld [vmem:[%s262] sm:$0xff]
      %s264 = scalar_lea.vmem %s242, 16
      %v265 = vld [vmem:[%s264] sm:$0xff]
      %s266 = scalar_lea.vmem %s242, 24
      %v267 = vld [vmem:[%s266] sm:$0xff]
      %s268 = scalar_lea.vmem %s242, 32
      %v269 = vld [vmem:[%s268] sm:$0xff]
      %v270 = vld [vmem:[%s246] sm:$0xff]
      %v271 = vld [vmem:[%s250] sm:$0xff]
      %v272 = vld [vmem:[%s255] sm:$0xff]
      %s273 = scalar_lea.vmem %s255, 8
      %v274 = vld [vmem:[%s273] sm:$0xff]
      %s275 = scalar_lea.vmem %s255, 16
      %v276 = vld [vmem:[%s275] sm:$0xff]
      %s277 = scalar_lea.vmem %s255, 24
      %v278 = vld [vmem:[%s277] sm:$0xff]
      %s279 = scalar_lea.vmem %s255, 32
      %v280 = vld [vmem:[%s279] sm:$0xff]
      %s281 = scalar_lea.vmem %s255, 40
      %v282 = vld [vmem:[%s281] sm:$0xff]
      %s283 = sld [smem:[#allocation3 + %s24]]
      %v284 = vlaneseq
      %v285 = vshrl.u32 %v284, 7
      %v286 = vmul.u32 %v285, 128
      %v287 = vlaneseq
      %v288 = vand.u32 %v287, 127
      %v289 = vadd.s32 %v286, %v288
      %v290 = vstv %s283
      %vm291 = vcmp.lt.s32.totalorder %v289, %v290
      %v292 = vsel %vm291, 1.0, 0.0
      %v293 = vsub.f32 %v292, %v280
      %v294 = vand.u32 2147483647, %v269
      %v295 = vsub.f32 0.0, %v294
      %v296 = vmul.f32 %v295, 1.442695
      %v297 = vpow.pop %v296
      %v298 = vmax.f32 %v269, 0.0
      %v299 = vmul.f32 %v269, %v280
      %v300 = vsub.f32 %v298, %v299
      %v301 = vadd.f32 %v297, 1.0
      %v302 = vlog2.pop %v301
      %v303 = vmul.f32 %v302, 0.6931472
      %v304 = vadd.f32 %v300, %v303
      %v305 = vrcp.pop %v301
      %vm306 = vcmp.ge.f32.partialorder %v269, 0.0
      %v307 = vmul.f32 %v297, %v305
      %v308 = vsel %vm306, %v305, %v307
      %vm309 = vcmp.gt.f32.partialorder %v280, 0.5
      %v310 = vsub.f32 1.0, %v308
      %v311 = vsel %vm309, %v308, %v310
      %v312 = vsub.f32 1.0, %v311
      %v313 = vmax.f32 %v312, 0.0
      %v314 = vmul.f32 %v313, 0.25
      %v315 = vrsqrt.pop %v313
      %v316 = vmul.f32 %v315, %v313
      %v317 = vmul.f32 %v316, %v315
      %v318 = vmul.f32 0.5, %v317
      %v319 = vsub.f32 1.5, %v318
      %v320 = vmul.f32 %v315, %v319
      %v321 = vmul.f32 %v313, %v320
      %vm322 = vcmp.eq.f32.partialorder %v313, inf
      %v323 = vsel %vm322, %v313, %v321
      %vm324 = vcmp.eq.f32.partialorder %v313, 0.0
      %v325 = vand.u32 %v313, 2147483648
      %v326 = vsel %vm324, %v325, %v323
      %v327 = vmul.f32 %v314, %v326
      %v328 = vmul.f32 %v327, %v304
      %v329 = vand.u32 2147483647, %v271
      %v330 = vsub.f32 0.0, %v329
      %v331 = vmul.f32 %v330, 1.442695
      %v332 = vpow.pop %v331
      %v333 = vmax.f32 %v271, 0.0
      %v334 = vmul.f32 %v271, %v280
      %v335 = vsub.f32 %v333, %v334
      %v336 = vadd.f32 %v332, 1.0
      %v337 = vlog2.pop %v336
      %v338 = vmul.f32 %v337, 0.6931472
      %v339 = vadd.f32 %v335, %v338
      %v340 = vrcp.pop %v336
      %vm341 = vcmp.ge.f32.partialorder %v271, 0.0
      %v342 = vmul.f32 %v332, %v340
      %v343 = vsel %vm341, %v340, %v342
      %v344 = vsub.f32 1.0, %v343
      %v345 = vsel %vm309, %v343, %v344
      %v346 = vsub.f32 1.0, %v345
      %v347 = vmax.f32 %v346, 0.0
      %v348 = vmul.f32 %v347, 0.25
      %v349 = vrsqrt.pop %v347
      %v350 = vmul.f32 %v349, %v347
      %v351 = vmul.f32 %v350, %v349
      %v352 = vmul.f32 0.5, %v351
      %v353 = vsub.f32 1.5, %v352
      %v354 = vmul.f32 %v349, %v353
      %v355 = vmul.f32 %v347, %v354
      %vm356 = vcmp.eq.f32.partialorder %v347, inf
      %v357 = vsel %vm356, %v347, %v355
      %vm358 = vcmp.eq.f32.partialorder %v347, 0.0
      %v359 = vand.u32 %v347, 2147483648
      %v360 = vsel %vm358, %v359, %v357
      %v361 = vmul.f32 %v348, %v360
      %v362 = vmul.f32 %v361, %v339
      %v363 = vsub.f32 %v270, %v282
      %v364 = vmul.f32 %v363, %v363
      %v365 = vand.u32 2147483647, %v261
      %v366 = vsub.f32 0.0, %v365
      %v367 = vmul.f32 %v366, 1.442695
      %v368 = vpow.pop %v367
      %v369 = vadd.f32 %v368, 1.0
      %v370 = vrcp.pop %v369
      %v371 = vmul.f32 %v369, %v370
      %v372 = vsub.f32 1.0, %v371
      %v373 = vmul.f32 %v370, %v372
      %v374 = vadd.f32 %v370, %v373
      %vm375 = vweird.f32 %v369
      %vm376 = vweird.f32 %v370
      %vm377 = vmor %vm375, %vm376
      %v378 = vsel %vm377, %v370, %v374
      %v379 = vand.u32 2147483647, %v369
      %vm380 = vcmp.eq.f32.partialorder %v379, 8.507059e+37
      %v381 = vand.u32 %v369, 2147483648
      %v382 = vor.u32 1.1754944e-38, %v381
      %v383 = vsel %vm380, %v382, %v378
      %v384 = vmul.f32 1.0, %v383
      %vm385 = vcmp.ge.f32.partialorder %v261, 0.0
      %v386 = vmul.f32 %v368, %v384
      %v387 = vsel %vm385, %v384, %v386
      %v388 = vand.u32 2147483647, %v263
      %v389 = vsub.f32 0.0, %v388
      %v390 = vmul.f32 %v389, 1.442695
      %v391 = vpow.pop %v390
      %v392 = vadd.f32 %v391, 1.0
      %v393 = vrcp.pop %v392
      %v394 = vmul.f32 %v392, %v393
      %v395 = vsub.f32 1.0, %v394
      %v396 = vmul.f32 %v393, %v395
      %v397 = vadd.f32 %v393, %v396
      %vm398 = vweird.f32 %v392
      %vm399 = vweird.f32 %v393
      %vm400 = vmor %vm398, %vm399
      %v401 = vsel %vm400, %v393, %v397
      %v402 = vand.u32 2147483647, %v392
      %vm403 = vcmp.eq.f32.partialorder %v402, 8.507059e+37
      %v404 = vand.u32 %v392, 2147483648
      %v405 = vor.u32 1.1754944e-38, %v404
      %v406 = vsel %vm403, %v405, %v401
      %v407 = vmul.f32 1.0, %v406
      %vm408 = vcmp.ge.f32.partialorder %v263, 0.0
      %v409 = vmul.f32 %v391, %v407
      %v410 = vsel %vm408, %v407, %v409
      %v411 = vmul.f32 %v265, 1.442695
      %v412 = vpow.pop %v411
      %v413 = vmul.f32 %v267, 1.442695
      %v414 = vpow.pop %v413
      %v415 = vmul.f32 %v412, 0.5
      %v416 = vmul.f32 %v414, 0.5
      %v417 = vmul.f32 %v276, 0.5
      %v418 = vmul.f32 %v278, 0.5
      %v419 = vsub.f32 %v387, %v415
      %v420 = vadd.f32 %v387, %v415
      %v421 = vsub.f32 %v410, %v416
      %v422 = vadd.f32 %v410, %v416
      %v423 = vsub.f32 %v272, %v417
      %v424 = vadd.f32 %v272, %v417
      %v425 = vsub.f32 %v274, %v418
      %v426 = vadd.f32 %v274, %v418
      %v427 = vmin.f32 %v420, %v424
      %v428 = vmax.f32 %v419, %v423
      %v429 = vsub.f32 %v427, %v428
      %v430 = vmax.f32 %v429, 0.0
      %v431 = vmin.f32 %v422, %v426
      %v432 = vmax.f32 %v421, %v425
      %v433 = vsub.f32 %v431, %v432
      %v434 = vmax.f32 %v433, 0.0
      %v435 = vmul.f32 %v430, %v434
      %v436 = vmul.f32 %v412, %v414
      %v437 = vmul.f32 %v276, %v278
      %v438 = vadd.f32 %v436, %v437
      %v439 = vsub.f32 %v438, %v435
      %v440 = vmax.f32 %v439, 1e-06
      %v441 = vrcp.pop %v440
      %v442 = vmul.f32 %v440, %v441
      %v443 = vsub.f32 1.0, %v442
      %v444 = vmul.f32 %v441, %v443
      %v445 = vadd.f32 %v441, %v444
      %vm446 = vweird.f32 %v440
      %vm447 = vweird.f32 %v441
      %vm448 = vmor %vm446, %vm447
      %v449 = vsel %vm448, %v441, %v445
      %v450 = vand.u32 2147483647, %v440
      %vm451 = vcmp.eq.f32.partialorder %v450, 8.507059e+37
      %v452 = vand.u32 %v440, 2147483648
      %v453 = vor.u32 1.1754944e-38, %v452
      %v454 = vsel %vm451, %v453, %v449
      %v455 = vmul.f32 %v435, %v454
      %v456 = vmax.f32 %v420, %v424
      %v457 = vmin.f32 %v419, %v423
      %v458 = vsub.f32 %v456, %v457
      %v459 = vmax.f32 %v422, %v426
      %v460 = vmin.f32 %v421, %v425
      %v461 = vsub.f32 %v459, %v460
      %v462 = vmul.f32 %v458, %v458
      %v463 = vmul.f32 %v461, %v461
      %v464 = vadd.f32 %v462, %v463
      %v465 = vsub.f32 %v387, %v272
      %v466 = vsub.f32 %v410, %v274
      %v467 = vmul.f32 %v465, %v465
      %v468 = vmul.f32 %v466, %v466
      %v469 = vadd.f32 %v467, %v468
      %v470 = vmax.f32 %v278, 1e-06
      %v471 = vrcp.pop %v470
      %v472 = vmul.f32 %v470, %v471
      %v473 = vsub.f32 1.0, %v472
      %v474 = vmul.f32 %v471, %v473
      %v475 = vadd.f32 %v471, %v474
      %vm476 = vweird.f32 %v470
      %vm477 = vweird.f32 %v471
      %vm478 = vmor %vm476, %vm477
      %v479 = vsel %vm478, %v471, %v475
      %v480 = vand.u32 2147483647, %v470
      %vm481 = vcmp.eq.f32.partialorder %v480, 8.507059e+37
      %v482 = vand.u32 %v470, 2147483648
      %v483 = vor.u32 1.1754944e-38, %v482
      %v484 = vsel %vm481, %v483, %v479
      %v485 = vmul.f32 %v276, %v484
      %v486 = vmax.f32 %v414, 1e-06
      %v487 = vrcp.pop %v486
      %v488 = vmul.f32 %v486, %v487
      %v489 = vsub.f32 1.0, %v488
      %v490 = vmul.f32 %v487, %v489
      %v491 = vadd.f32 %v487, %v490
      %vm492 = vweird.f32 %v486
      %vm493 = vweird.f32 %v487
      %vm494 = vmor %vm492, %vm493
      %v495 = vsel %vm494, %v487, %v491
      %v496 = vand.u32 2147483647, %v486
      %vm497 = vcmp.eq.f32.partialorder %v496, 8.507059e+37
      %v498 = vand.u32 %v486, 2147483648
      %v499 = vor.u32 1.1754944e-38, %v498
      %v500 = vsel %vm497, %v499, %v495
      %v501 = vmul.f32 %v412, %v500
      %v502 = vsub.f32 %v485, %v501
      %v503 = vmul.f32 %v485, %v501
      %v504 = vadd.f32 %v503, 1.0
      %v505 = vrcp.pop %v504
      %v506 = vmul.f32 %v504, %v505
      %v507 = vsub.f32 1.0, %v506
      %v508 = vmul.f32 %v505, %v507
      %v509 = vadd.f32 %v505, %v508
      %vm510 = vweird.f32 %v504
      %vm511 = vweird.f32 %v505
      %vm512 = vmor %vm510, %vm511
      %v513 = vsel %vm512, %v505, %v509
      %v514 = vand.u32 2147483647, %v504
      %vm515 = vcmp.eq.f32.partialorder %v514, 8.507059e+37
      %v516 = vand.u32 %v504, 2147483648
      %v517 = vor.u32 1.1754944e-38, %v516
      %v518 = vsel %vm515, %v517, %v513
      %v519 = vmul.f32 %v502, %v518
      %vm520 = vcmp.lt.f32.partialorder %v519, 0.0
      %v521 = vsel %vm520, -1.0, 1.0
      %v522 = vand.u32 2147483647, %v519
      %vm523 = vcmp.gt.f32.partialorder %v522, 2.4142137
      %vm524 = vmxor %vm523, 1
      %vm525 = vcmp.gt.f32.partialorder %v522, 0.41421357
      %vm526 = vmand %vm524, %vm525
      %v527 = vsel %vm526, 0.7853982, 0.0
      %v528 = vsel %vm523, 1.5707964, %v527
      %v529 = vmax.f32 %v522, 1e-30
      %v530 = vrcp.pop %v529
      %v531 = vmul.f32 %v529, %v530
      %v532 = vsub.f32 1.0, %v531
      %v533 = vmul.f32 %v530, %v532
      %v534 = vadd.f32 %v530, %v533
      %vm535 = vweird.f32 %v529
      %vm536 = vweird.f32 %v530
      %vm537 = vmor %vm535, %vm536
      %v538 = vsel %vm537, %v530, %v534
      %v539 = vand.u32 2147483647, %v529
      %vm540 = vcmp.eq.f32.partialorder %v539, 8.507059e+37
      %v541 = vand.u32 %v529, 2147483648
      %v542 = vor.u32 1.1754944e-38, %v541
      %v543 = vsel %vm540, %v542, %v538
      %v544 = vmul.f32 -1.0, %v543
      %v545 = vsub.f32 %v522, 1.0
      %v546 = vadd.f32 %v522, 1.0
      %v547 = vrcp.pop %v546
      %v548 = vmul.f32 %v546, %v547
      %v549 = vsub.f32 1.0, %v548
      %v550 = vmul.f32 %v547, %v549
      %v551 = vadd.f32 %v547, %v550
      %vm552 = vweird.f32 %v546
      %vm553 = vweird.f32 %v547
      %vm554 = vmor %vm552, %vm553
      %v555 = vsel %vm554, %v547, %v551
      %v556 = vand.u32 2147483647, %v546
      %vm557 = vcmp.eq.f32.partialorder %v556, 8.507059e+37
      %v558 = vand.u32 %v546, 2147483648
      %v559 = vor.u32 1.1754944e-38, %v558
      %v560 = vsel %vm557, %v559, %v555
      %v561 = vmul.f32 %v545, %v560
      %v562 = vsel %vm526, %v561, %v522
      %v563 = vsel %vm523, %v544, %v562
      %v564 = vmul.f32 %v563, %v563
      %v565 = vmul.f32 %v564, 0.080537446
      %v566 = vsub.f32 %v565, 0.13877685
      %v567 = vmul.f32 %v566, %v564
      %v568 = vadd.f32 %v567, 0.19977711
      %v569 = vmul.f32 %v568, %v564
      %v570 = vsub.f32 %v569, 0.3333295
      %v571 = vmul.f32 %v570, %v564
      %v572 = vmul.f32 %v571, %v563
      %v573 = vadd.f32 %v572, %v563
      %v574 = vadd.f32 %v528, %v573
      %v575 = vmul.f32 %v521, %v574
      %v576 = vmul.f32 %v575, 0.40528473
      %v577 = vmul.f32 %v576, %v575
      %v578 = vsub.f32 1.0, %v455
      %v579 = vadd.f32 %v578, %v577
      %v580 = vmax.f32 %v579, 1e-06
      %v581 = vrcp.pop %v580
      %v582 = vmul.f32 %v580, %v581
      %v583 = vsub.f32 1.0, %v582
      %v584 = vmul.f32 %v581, %v583
      %v585 = vadd.f32 %v581, %v584
      %vm586 = vweird.f32 %v580
      %vm587 = vweird.f32 %v581
      %vm588 = vmor %vm586, %vm587
      %v589 = vsel %vm588, %v581, %v585
      %v590 = vand.u32 2147483647, %v580
      %vm591 = vcmp.eq.f32.partialorder %v590, 8.507059e+37
      %v592 = vand.u32 %v580, 2147483648
      %v593 = vor.u32 1.1754944e-38, %v592
      %v594 = vsel %vm591, %v593, %v589
      %v595 = vmul.f32 %v577, %v594
      %v596 = vmax.f32 %v464, 1e-06
      %v597 = vrcp.pop %v596
      %v598 = vmul.f32 %v596, %v597
      %v599 = vsub.f32 1.0, %v598
      %v600 = vmul.f32 %v597, %v599
      %v601 = vadd.f32 %v597, %v600
      %vm602 = vweird.f32 %v596
      %vm603 = vweird.f32 %v597
      %vm604 = vmor %vm602, %vm603
      %v605 = vsel %vm604, %v597, %v601
      %v606 = vand.u32 2147483647, %v596
      %vm607 = vcmp.eq.f32.partialorder %v606, 8.507059e+37
      %v608 = vand.u32 %v596, 2147483648
      %v609 = vor.u32 1.1754944e-38, %v608
      %v610 = vsel %vm607, %v609, %v605
      %v611 = vmul.f32 %v469, %v610
      %v612 = vsub.f32 %v455, %v611
      %v613 = vmul.f32 %v595, %v577
      %v614 = vsub.f32 %v612, %v613
      %v615 = vsub.f32 1.0, %v614
      %v616 = vmul.f32 %v328, %v280
      %v617 = vadd.f32 %v616, 0.0
      %618 = vst [vmem:[%s260] sm:$0xff] %v617
      %v619 = vmul.f32 %v328, %v293
      %v620 = vadd.f32 %v619, 0.0
      %s621 = scalar_lea.vmem %s260, 8
      %622 = vst [vmem:[%s621] sm:$0xff] %v620
      %v623 = vadd.f32 %v280, 0.0
      %s624 = scalar_lea.vmem %s260, 16
      %625 = vst [vmem:[%s624] sm:$0xff] %v623
      %v626 = vadd.f32 %v293, 0.0
      %s627 = scalar_lea.vmem %s260, 24
      %628 = vst [vmem:[%s627] sm:$0xff] %v626
      %v629 = vmul.f32 %v362, %v292
      %v630 = vadd.f32 %v629, 0.0
      %s631 = scalar_lea.vmem %s260, 32
      %632 = vst [vmem:[%s631] sm:$0xff] %v630
      %v633 = vmul.f32 %v364, %v280
      %v634 = vadd.f32 %v633, 0.0
      %s635 = scalar_lea.vmem %s260, 40
      %636 = vst [vmem:[%s635] sm:$0xff] %v634
      %v637 = vmul.f32 %v615, %v280
      %v638 = vadd.f32 %v637, 0.0
      %s639 = scalar_lea.vmem %s260, 48
      %640 = vst [vmem:[%s639] sm:$0xff] %v638
      %v641 = vadd.f32 %v292, 0.0
      %s642 = scalar_lea.vmem %s260, 56
      %643 = vst [vmem:[%s642] sm:$0xff] %v641
      %p644 = scmp.lt.s32.totalorder %s24, 2
      %s645 = scalar_select %p644, %s24, 2
      %s646 = smul.addr %s645, 8
      %s647 = smul.addr %s646, 8
      %s648 = scalar_lea.vmem %s5, %s647
      // Predicated region
      $region37: #{yolo_one_loss.1} parent=35 // pred_check
        %p649 = pneg %p146
      $region38: #{yolo_one_loss.1} parent=35 // pred_check_branch
        %651 = sbr.rel (%p649) target = $region40
      $region39: #{yolo_one_loss.1} parent=35 // pred_region
        _
      $region40: #{yolo_one_loss.1} parent=35 // pred_fallthru
        _
    $region36: #{yolo_one_loss.1} parent=5 // pred_fallthru
      _
    %p652 = scmp.le.s32.totalorder 2, %s19
    // Predicated region
    $region41: #{yolo_one_loss.1} parent=5 // pred_check
      %p653 = pneg %p652
    $region42: #{yolo_one_loss.1} parent=5 // pred_check_branch
      %655 = sbr.rel (%p653) target = $region44
    $region43: #{yolo_one_loss.1} parent=5 // pred_region
      %s656 = ssub.s32 %s19, 2
      // Predicated region
      $region45: #{yolo_one_loss.1} parent=43 // pred_check
        %p657 = pneg %p152
      $region46: #{yolo_one_loss.1} parent=43 // pred_check_branch
        %659 = sbr.rel (%p657) target = $region48
      $region47: #{yolo_one_loss.1} parent=43 // pred_region
        %p660 = scmp.lt.s32.totalorder %s25, 2
        %s661 = scalar_select %p660, %s25, 2
        %s662 = smul.addr %s661, 8
        %s663 = smul.addr %s662, 8
        %s664 = scalar_lea.vmem %s5, %s663
      $region48: #{yolo_one_loss.1} parent=43 // pred_fallthru
        _
    $region44: #{yolo_one_loss.1} parent=5 // pred_fallthru
      _
  $region6: #{yolo_one_loss.1} parent=0 // loop_footer
    %s23 = sadd.s32 1, %s19
  $region7: #{yolo_one_loss.1} parent=0 // loop_footer_branch
    %18 = sbr.rel target = $region3
  $region8: #{yolo_one_loss.1} parent=0 // loop_exit
    _

</llo_original>
